<compile_context>
chip_gen: v7x
topology: tpu7x:2x2x1
jax: 0.10.0
libtpu: 0.0.40
codegen_flags: <defaults>
</compile_context>

<pallas_src>
import jax
import jax.numpy as jnp
from jax import lax
from jax.experimental import pallas as pl
from jax.experimental.pallas import tpu as pltpu


_VMEM_LIMIT_BYTES = 32 * 1024 * 1024    # explicit request; safe on v5e/v6e/v7x
_BUFFER_BUDGET = 24 * 1024 * 1024       # pipeline buffers (headroom vs. limit)
_TARGET_STEP_BYTES = 4 * 1024 * 1024    # >= ~4 MiB of x traffic per grid step


def _rope_kernel(x_ref, cos_ref, sin_ref, o_ref):
    """One (tb, tn, D) tile of x.

    x holds interleaved (real, imag) pairs along the last axis:
        out[2k]   = x[2k] * cos_k - x[2k+1] * sin_k
        out[2k+1] = x[2k] * sin_k + x[2k+1] * cos_k
    cos_ref carries cos_k duplicated on lanes (2k, 2k+1); sin_ref carries
    (-sin_k, +sin_k) on lanes (2k, 2k+1) (sign pre-folded), so per row
        out = x * cos + swap_within_pairs(x) * sin .
    """
    c = cos_ref[...]                      # (tn, D) f32
    s = sin_ref[...]                      # (tn, D) f32, sign-folded
    d = c.shape[-1]

    # Hoisted lane-parity mask (shared by every batch row; JAX does not CSE
    # broadcasts, so keep it out of the loop).
    lane = lax.broadcasted_iota(jnp.int32, c.shape, 1)
    even = (lane & 1) == 0

    def body(b, carry):
        x = x_ref[b].astype(jnp.float32)              # (tn, D)
        # Within-pair lane swap via XLU rolls + lane-parity select:
        #   swapped[:, 2k] = x[:, 2k+1],  swapped[:, 2k+1] = x[:, 2k]
        nxt = pltpu.roll(x, shift=d - 1, axis=1)      # nxt[:, j] = x[:, (j+1)%d]
        prv = pltpu.roll(x, shift=1, axis=1)          # prv[:, j] = x[:, (j-1)%d]
        swapped = jnp.where(even, nxt, prv)
        o_ref[b] = (x * c + swapped * s).astype(o_ref.dtype)
        return carry

    tb = x_ref.shape[0]
    lax.fori_loop(0, tb, body, 0, unroll=tb <= 8)


def _trig_tables(n, d, base):
    """(n, d) interleaved-cos / sign-folded-sin tables in f32."""
    k_max = d // 2
    k = jnp.arange(k_max, dtype=jnp.float32)
    theta = 1.0 / jnp.float32(base) ** (k / jnp.float32(k_max))
    ang = jnp.arange(n, dtype=jnp.float32)[:, None] * theta[None, :]   # (n, k_max)
    c = jnp.cos(ang)
    s = jnp.sin(ang)
    cos_t = jnp.repeat(c, 2, axis=-1)                   # [c0, c0, c1, c1, ...]
    sin_t = jnp.stack([-s, s], axis=-1).reshape(n, d)   # [-s0, s0, -s1, s1, ...]
    return cos_t, sin_t


def _round_up(v, m):
    return ((v + m - 1) // m) * m


def _choose_tiles(B, N, D, itemsize):
    """Pick (tb, tn): batch-block and position-block sizes.

    Goals: >= ~4 MiB of x traffic (in+out) per grid step, pipeline buffers
    under the VMEM budget, block dims legal ((8,128)-aligned or full axis),
    and at least two grid steps so both v7x TensorCores get work.
    """
    # dtype-aware sublane packing multiple (8 f32, 16 bf16, 32 int8/fp8)
    sub = 8 if itemsize >= 4 else (16 if itemsize == 2 else 32)
    row_bytes = D * itemsize

    # Position tile: cap at 1024 rows (keeps trig buffers small).  1024 is a
    # multiple of every packing width; tn == N (full axis) is always legal.
    tn = min(N, 1024)

    # Batch tile: big enough that one grid step moves >= ~4 MiB of x.
    tb = max(1, -(-_TARGET_STEP_BYTES // (2 * tn * row_bytes)))
    tb = min(tb, B)

    def buf_bytes(tb_, tn_):
        # double-buffered x in + x out, plus double-buffered cos & sin (f32)
        return 4 * tb_ * tn_ * row_bytes + 4 * tn_ * D * 4

    while tb > 1 and buf_bytes(tb, tn) > _BUFFER_BUDGET:
        tb -= 1
    while tn > sub and buf_bytes(tb, tn) > _BUFFER_BUDGET:
        tn = max(sub, (tn // 2) - (tn // 2) % sub)   # stays 8-aligned -> legal

    # Guarantee >= 2 grid steps (megacore sharding on v7x).
    if pl.cdiv(N, tn) * pl.cdiv(B, tb) < 2:
        if B >= 2:
            tb = pl.cdiv(B, 2)
        elif N >= 2 * sub:
            tn = max(sub, _round_up(pl.cdiv(N, 2), sub))
    return tb, tn


def rope_pallas(x, base=10000):
    """Rotary positional embedding matching the PyTorch RoPE.forward for a
    (B, N, D) input (one positional axis, interleaved (re, im) pairs)."""
    B, N, D = x.shape
    assert D % 2 == 0, "feature dim must be even"

    # Lane-density: if D is narrower than 128 lanes, fold adjacent positions
    # into one 128-lane row (pure wrapper reshape; trig tables fold the same
    # way, so the kernel math is unchanged and stores stay unmasked).
    fold = 1
    if D % 128 != 0 and 128 % D == 0 and N % (128 // D) == 0:
        fold = 128 // D

    cos_t, sin_t = _trig_tables(N, D, base)
    if fold > 1:
        xw = x.reshape(B, N // fold, fold * D)
        cos_t = cos_t.reshape(N // fold, fold * D)
        sin_t = sin_t.reshape(N // fold, fold * D)
    else:
        xw = x
    Bw, Nw, Dw = xw.shape

    tb, tn = _choose_tiles(Bw, Nw, Dw, xw.dtype.itemsize)
    n_tiles = pl.cdiv(Nw, tn)
    b_tiles = pl.cdiv(Bw, tb)

    x_spec = pl.BlockSpec((tb, tn, Dw), lambda n, b: (b, n, 0))
    trig_spec = pl.BlockSpec((tn, Dw), lambda n, b: (n, 0))

    # Grid order (n_tiles, b_tiles): batch is the innermost axis, so the trig
    # blocks keep the same block index across the batch loop and are not
    # re-fetched every grid step.
    out = pl.pallas_call(
        _rope_kernel,
        grid=(n_tiles, b_tiles),
        in_specs=[x_spec, trig_spec, trig_spec],
        out_specs=x_spec,
        out_shape=jax.ShapeDtypeStruct((Bw, Nw, Dw), x.dtype),
        compiler_params=pltpu.CompilerParams(
            dimension_semantics=("parallel", "parallel"),
            vmem_limit_bytes=_VMEM_LIMIT_BYTES),
    )(xw, cos_t, sin_t)

    if fold > 1:
        out = out.reshape(B, N, D)
    return out


def rope_ref(x, base=10000):
    """Pure-JAX reference matching the PyTorch semantics."""
    B, N, D = x.shape
    k_max = D // 2
    theta = 1.0 / base ** (jnp.arange(k_max, dtype=jnp.float32) / k_max)
    ang = jnp.arange(N, dtype=jnp.float32)[:, None] * theta    # (N, k_max)
    c, s = jnp.cos(ang), jnp.sin(ang)
    xp = x.astype(jnp.float32).reshape(B, N, k_max, 2)
    xr, xi = xp[..., 0], xp[..., 1]
    out = jnp.stack([xr * c - xi * s, xr * s + xi * c], axis=-1)
    return out.reshape(B, N, D).astype(x.dtype)


if __name__ == "__main__":
    key = jax.random.PRNGKey(0)

    # D = 128 (lane-aligned head dim)
    B, N, D = 2, 16, 128
    x = jax.random.normal(key, (B, N, D), dtype=jnp.float32)
    out = jax.block_until_ready(rope_pallas(x))
    ref = rope_ref(x)
    assert out.shape == x.shape and out.dtype == x.dtype
    assert jnp.allclose(out, ref, atol=1e-4, rtol=1e-4), "mismatch vs reference (D=128)"

    # D = 64 (exercises the position-fold / lane-density path)
    B2, N2, D2 = 2, 16, 64
    x2 = jax.random.normal(jax.random.PRNGKey(1), (B2, N2, D2), dtype=jnp.float32)
    out2 = jax.block_until_ready(rope_pallas(x2))
    ref2 = rope_ref(x2)
    assert out2.shape == x2.shape and out2.dtype == x2.dtype
    assert jnp.allclose(out2, ref2, atol=1e-4, rtol=1e-4), "mismatch vs reference (D=64)"

    print("KERNEL_OK")
</pallas_src>

<mosaic_0001>
module attributes {stable_mosaic.version = 11 : i64} {
  func.func @_rope_kernel(%arg0: i32, %arg1: i32, %arg2: memref<1x16x128xf32, #tpu.memory_space<vmem>>, %arg3: memref<16x128xf32, #tpu.memory_space<vmem>>, %arg4: memref<16x128xf32, #tpu.memory_space<vmem>>, %arg5: memref<1x16x128xf32, #tpu.memory_space<vmem>>) attributes {dimension_semantics = [#tpu.dimension_semantics<parallel>, #tpu.dimension_semantics<parallel>], iteration_bounds = array<i64: 1, 2>, scalar_prefetch = 0 : i64, scratch_operands = 0 : i64, tpu.core_type = #tpu.core_type<tc>, window_params = [{transform_indices = @transform_0, window_bounds = array<i64: 1, 16, 128>}, {transform_indices = @transform_1, window_bounds = array<i64: 16, 128>}, {transform_indices = @transform_2, window_bounds = array<i64: 16, 128>}, {transform_indices = @transform_3, window_bounds = array<i64: 1, 16, 128>}]} {
    %c0 = arith.constant 0 : index
    %c0_0 = arith.constant 0 : index
    %0 = vector.load %arg3[%c0, %c0_0] : memref<16x128xf32, #tpu.memory_space<vmem>>, vector<16x128xf32>
    %c0_1 = arith.constant 0 : index
    %c0_2 = arith.constant 0 : index
    %1 = vector.load %arg4[%c0_1, %c0_2] : memref<16x128xf32, #tpu.memory_space<vmem>>, vector<16x128xf32>
    %2 = tpu.iota {dimensions = array<i32: 1>} : vector<16x128xi32>
    %c1_i32 = arith.constant 1 : i32
    %3 = vector.broadcast %c1_i32 : i32 to vector<16x128xi32>
    %4 = arith.andi %2, %3 : vector<16x128xi32>
    %c0_i32 = arith.constant 0 : i32
    %5 = vector.broadcast %c0_i32 : i32 to vector<16x128xi32>
    %6 = arith.cmpi eq, %4, %5 : vector<16x128xi32>
    %c0_i32_3 = arith.constant 0 : i32
    %7 = arith.index_cast %c0_i32_3 : i32 to index
    %c0_4 = arith.constant 0 : index
    %c0_5 = arith.constant 0 : index
    %8 = vector.load %arg2[%7, %c0_4, %c0_5] : memref<1x16x128xf32, #tpu.memory_space<vmem>>, vector<1x16x128xf32>
    %9 = vector.shape_cast %8 : vector<1x16x128xf32> to vector<16x128xf32>
    %c127_i32 = arith.constant 127 : i32
    %10 = tpu.dynamic_rotate %9 by %c127_i32 dim 1 : vector<16x128xf32>, i32 -> vector<16x128xf32>
    %c1_i32_6 = arith.constant 1 : i32
    %11 = tpu.dynamic_rotate %9 by %c1_i32_6 dim 1 : vector<16x128xf32>, i32 -> vector<16x128xf32>
    %12 = arith.select %6, %10, %11 : vector<16x128xi1>, vector<16x128xf32>
    %13 = arith.mulf %9, %0 : vector<16x128xf32>
    %14 = arith.mulf %12, %1 : vector<16x128xf32>
    %15 = arith.addf %13, %14 : vector<16x128xf32>
    %16 = arith.index_cast %c0_i32_3 : i32 to index
    %c0_7 = arith.constant 0 : index
    %c0_8 = arith.constant 0 : index
    %17 = vector.load %arg5[%16, %c0_7, %c0_8] : memref<1x16x128xf32, #tpu.memory_space<vmem>>, vector<1x16x128xf32>
    %18 = vector.shape_cast %17 : vector<1x16x128xf32> to vector<16x128xf32>
    %19 = vector.shape_cast %15 : vector<16x128xf32> to vector<1x16x128xf32>
    tpu.vector_store %arg5[%16, %c0_7, %c0_8], %19 {strides = array<i32>} : memref<1x16x128xf32, #tpu.memory_space<vmem>>, vector<1x16x128xf32>,
    %c1_i32_9 = arith.constant 1 : i32
    return
  }
  func.func @transform_0(%arg0: i32, %arg1: i32) -> (i32, i32, i32) {
    %c0_i32 = arith.constant 0 : i32
    %c0_i32_0 = arith.constant 0 : i32
    return %arg1, %arg0, %c0_i32 : i32, i32, i32
  }
  func.func @transform_1(%arg0: i32, %arg1: i32) -> (i32, i32) {
    %c0_i32 = arith.constant 0 : i32
    %c0_i32_0 = arith.constant 0 : i32
    return %arg0, %c0_i32 : i32, i32
  }
  func.func @transform_2(%arg0: i32, %arg1: i32) -> (i32, i32) {
    %c0_i32 = arith.constant 0 : i32
    %c0_i32_0 = arith.constant 0 : i32
    return %arg0, %c0_i32 : i32, i32
  }
  func.func @transform_3(%arg0: i32, %arg1: i32) -> (i32, i32, i32) {
    %c0_i32 = arith.constant 0 : i32
    %c0_i32_0 = arith.constant 0 : i32
    return %arg1, %arg0, %c0_i32 : i32, i32, i32
  }
}

</mosaic_0001>

<llo_original>
// kernel: tpu_custom_call.1
$region0: #{tpu_custom_call.1}
  #allocation0 [shape = 'u32[]', space=smem, size = 0x4, offset = 0x4, fixed_abs, tag = 'smem constant byte address 0x4 - core index']
  #allocation1 [shape = 'u32[144,128]{1,0:T(1,128)}', space=vmem, size = 0x12000, scoped, tag = 'internal scratch']
  %s0 = inlined_call_operand.hbm [shape: f32[2,16,128], index: 0, kind: input, shape index: {}]
  %s1 = inlined_call_operand.hbm [shape: f32[16,128], index: 1, kind: input, shape index: {}]
  %s2 = inlined_call_operand.hbm [shape: f32[16,128], index: 2, kind: input, shape index: {}]
  %s3 = inlined_call_operand.hbm [shape: f32[2,16,128], index: 3, kind: output, shape index: {}]
  %s4 = sld [smem:[#allocation0]]
  $region57: #{tpu_custom_call.1} parent=0
    _
  %s6 = ssub.s32 1, %s4
  %s7 = scalar_select 0, %s6, %s4
  $region1: #{tpu_custom_call.1} parent=0
    #allocation2 [shape = 'u8[16384]{0}', space=vmem, size = 0x4000, scoped, tag = 'input window, operand 0']
    #allocation3 [shape = 's32[2]{0}', space=sflag, size = 0x8, scoped, tag = 'scoped memory for tpu_custom_call.1']
    #allocation4 [shape = 's32[2]{0}', space=sflag, size = 0x8, scoped, tag = 'scoped memory for tpu_custom_call.1']
    #allocation5 [shape = 'u8[8192]{0}', space=vmem, size = 0x2000, scoped, tag = 'input window, operand 1, single buffered']
    #allocation6 [shape = 's32[1]{0}', space=sflag, size = 0x4, scoped, tag = 'scoped memory for tpu_custom_call.1']
    #allocation7 [shape = 'u8[8192]{0}', space=vmem, size = 0x2000, scoped, tag = 'input window, operand 2, single buffered']
    #allocation8 [shape = 'u8[16384]{0}', space=vmem, size = 0x4000, scoped, tag = 'output window, operand 0']
    %8 = vsyncpa [#allocation3], 0
    %s9 = scalar_lea.sflag [#allocation3], 1
    %10 = vsyncpa %s9, 0
    %11 = vsyncpa [#allocation6], 0
    %12 = vsyncpa [#allocation4], 0
    %s13 = scalar_lea.sflag [#allocation4], 1
    %14 = vsyncpa %s13, 0
    loop: start=0, step=1, limit=4
    $region2: #{tpu_custom_call.1} parent=1 // loop_pre_header
      _
    $region3: #{tpu_custom_call.1} parent=1 // loop_header
      %s16 = sphi 0, %s20
      %p17 = scmp.ge.s32.totalorder %s16, 4
      %s23 = sphi 0, %s35
      %s24 = sphi 0, %s31
      %s25 = sphi 0, %s23
      %s26 = sphi 0, %s24
      %s27 = sphi 0, %s25
      %s28 = sphi 0, %s26
      %s40 = sphi 0, %s42
      %s43 = sphi 0, %s40
      %s44 = sphi 0, %s43
      %s60 = sphi 0, %s44
      %s66 = sphi 0, %s68
      %s69 = sphi 0, %s66
      %s70 = sphi 0, %s69
      %s86 = sphi 0, %s70
      %s92 = sphi 0, %s94
      %s95 = sphi 0, %s92
      %s96 = sphi 0, %s95
      %s112 = sphi 0, %s96
      %s120 = sphi 0, %s122
      %s123 = sphi 0, %s120
      %s124 = sphi 0, %s123
      %s140 = sphi 0, %s124
    $region4: #{tpu_custom_call.1} parent=1 // loop_header_branch
      %19 = sbr.rel (%p17) target = $region8
    $region5: #{tpu_custom_call.1} parent=1 // loop_body
      %s21 = ssub.s32 %s16, 1
      %s22 = ssub.s32 %s16, 2
      %s29 = sadd.s32 1, %s24
      %p30 = scmp.ge.s32.totalorder %s29, 2
      %s31 = scalar_select %p30, 0, %s29
      %s32 = sadd.s32 1, %s23
      %s33 = scalar_select %p30, %s32, %s23
      %p34 = scmp.ge.s32.totalorder %s33, 1
      %s35 = scalar_select %p34, 0, %s33
      %s36 = ssub.s32 %s24, %s31
      %s37 = ssub.s32 %s23, %s35
      %s38 = sor.u32 %s36, %s37
      %p39 = scmp.eq.s32.totalorder %s38, 0
      %s41 = sadd.s32 %s40, 1
      %s42 = scalar_select %p39, %s40, %s41
      %p45 = pneg %p39
      %p46 = scmp.eq.s32.totalorder %s16, 1
      %p47 = por %p45, %p46
      %p48 = scmp.ne.s32.totalorder %s40, %s43
      %p49 = scmp.eq.s32.totalorder %s16, 0
      %p50 = por %p48, %p49
      %p51 = scmp.ne.s32.totalorder %s40, %s43
      %p52 = scmp.eq.s32.totalorder %s21, 1
      %p53 = por %p51, %p52
      %p54 = scmp.ne.s32.totalorder %s43, %s44
      %p55 = scmp.eq.s32.totalorder %s21, 0
      %p56 = por %p54, %p55
      %p57 = scmp.ne.s32.totalorder %s43, %s44
      %p58 = scmp.eq.s32.totalorder %s22, 1
      %p59 = por %p57, %p58
      %p61 = scmp.ne.s32.totalorder %s44, %s60
      %p62 = scmp.eq.s32.totalorder %s22, 0
      %p63 = por %p61, %p62
      %s64 = ssub.s32 %s23, %s35
      %p65 = scmp.eq.s32.totalorder %s64, 0
      %s67 = sadd.s32 %s66, 1
      %s68 = scalar_select %p65, %s66, %s67
      %p71 = pneg %p65
      %p72 = scmp.eq.s32.totalorder %s16, 1
      %p73 = por %p71, %p72
      %p74 = scmp.ne.s32.totalorder %s66, %s69
      %p75 = scmp.eq.s32.totalorder %s16, 0
      %p76 = por %p74, %p75
      %p77 = scmp.ne.s32.totalorder %s66, %s69
      %p78 = scmp.eq.s32.totalorder %s21, 1
      %p79 = por %p77, %p78
      %p80 = scmp.ne.s32.totalorder %s69, %s70
      %p81 = scmp.eq.s32.totalorder %s21, 0
      %p82 = por %p80, %p81
      %p83 = scmp.ne.s32.totalorder %s69, %s70
      %p84 = scmp.eq.s32.totalorder %s22, 1
      %p85 = por %p83, %p84
      %p87 = scmp.ne.s32.totalorder %s70, %s86
      %p88 = scmp.eq.s32.totalorder %s22, 0
      %p89 = por %p87, %p88
      %s90 = ssub.s32 %s23, %s35
      %p91 = scmp.eq.s32.totalorder %s90, 0
      %s93 = sadd.s32 %s92, 1
      %s94 = scalar_select %p91, %s92, %s93
      %p97 = pneg %p91
      %p98 = scmp.eq.s32.totalorder %s16, 1
      %p99 = por %p97, %p98
      %p100 = scmp.ne.s32.totalorder %s92, %s95
      %p101 = scmp.eq.s32.totalorder %s16, 0
      %p102 = por %p100, %p101
      %p103 = scmp.ne.s32.totalorder %s92, %s95
      %p104 = scmp.eq.s32.totalorder %s21, 1
      %p105 = por %p103, %p104
      %p106 = scmp.ne.s32.totalorder %s95, %s96
      %p107 = scmp.eq.s32.totalorder %s21, 0
      %p108 = por %p106, %p107
      %p109 = scmp.ne.s32.totalorder %s95, %s96
      %p110 = scmp.eq.s32.totalorder %s22, 1
      %p111 = por %p109, %p110
      %p113 = scmp.ne.s32.totalorder %s96, %s112
      %p114 = scmp.eq.s32.totalorder %s22, 0
      %p115 = por %p113, %p114
      %s116 = ssub.s32 %s24, %s31
      %s117 = ssub.s32 %s23, %s35
      %s118 = sor.u32 %s116, %s117
      %p119 = scmp.eq.s32.totalorder %s118, 0
      %s121 = sadd.s32 %s120, 1
      %s122 = scalar_select %p119, %s120, %s121
      %p125 = pneg %p119
      %p126 = scmp.eq.s32.totalorder %s16, 1
      %p127 = por %p125, %p126
      %p128 = scmp.ne.s32.totalorder %s120, %s123
      %p129 = scmp.eq.s32.totalorder %s16, 0
      %p130 = por %p128, %p129
      %p131 = scmp.ne.s32.totalorder %s120, %s123
      %p132 = scmp.eq.s32.totalorder %s21, 1
      %p133 = por %p131, %p132
      %p134 = scmp.ne.s32.totalorder %s123, %s124
      %p135 = scmp.eq.s32.totalorder %s21, 0
      %p136 = por %p134, %p135
      %p137 = scmp.ne.s32.totalorder %s123, %s124
      %p138 = scmp.eq.s32.totalorder %s22, 1
      %p139 = por %p137, %p138
      %p141 = scmp.ne.s32.totalorder %s124, %s140
      %p142 = scmp.eq.s32.totalorder %s22, 0
      %p143 = por %p141, %p142
      %p144 = scmp.le.s32.totalorder 1, %s16
      %p145 = scmp.lt.s32.totalorder %s16, 3
      %p146 = pnand %p144, %p145
      %p147 = pneg %p146
      // Predicated region
      $region9: #{tpu_custom_call.1} parent=5 // pred_check
        _
      $region10: #{tpu_custom_call.1} parent=5 // pred_check_branch
        %149 = sbr.rel (%p146) target = $region12
      $region11: #{tpu_custom_call.1} parent=5 // pred_region
        %s150 = ssub.s32 %s16, 1
        // Predicated region
        $region13: #{tpu_custom_call.1} parent=11 // pred_check
          %p151 = pneg %p82
        $region14: #{tpu_custom_call.1} parent=11 // pred_check_branch
          %153 = sbr.rel (%p151) target = $region16
        $region15: #{tpu_custom_call.1} parent=11 // pred_region
          %s154 = smul.u32 2, %s25
          %s156 = ssub.s32 256, 256
          %157 = vsyncadd [#allocation6], %s156
          %s158 = smul.addr %s154, 128
          %s159 = scalar_lea.hbm %s1, %s158
          %s160 = sshll.u32 [#allocation5], 4
          %s161 = int_to_ptr.vmem [resolvable:$true] %s160
          %166 = dma.hbm_to_vmem [thread:$0]  %s159, 256, %s161, [#allocation6], 128, 128, 8
        $region16: #{tpu_custom_call.1} parent=11 // pred_fallthru
          _
        // Predicated region
        $region17: #{tpu_custom_call.1} parent=11 // pred_check
          %p167 = pneg %p108
        $region18: #{tpu_custom_call.1} parent=11 // pred_check_branch
          %169 = sbr.rel (%p167) target = $region20
        $region19: #{tpu_custom_call.1} parent=11 // pred_region
          %s170 = smul.u32 2, %s25
          %s172 = ssub.s32 256, 256
          %173 = vsyncadd [#allocation6], %s172
          %s174 = smul.addr %s170, 128
          %s175 = scalar_lea.hbm %s2, %s174
          %s176 = sshll.u32 [#allocation7], 4
          %s177 = int_to_ptr.vmem [resolvable:$true] %s176
          %182 = dma.hbm_to_vmem [thread:$0]  %s175, 256, %s177, [#allocation6], 128, 128, 8
        $region20: #{tpu_custom_call.1} parent=11 // pred_fallthru
          _
      $region12: #{tpu_custom_call.1} parent=5 // pred_fallthru
        _
      %p183 = scmp.lt.s32.totalorder %s16, 2
      // Predicated region
      $region21: #{tpu_custom_call.1} parent=5 // pred_check
        %p184 = pneg %p183
      $region22: #{tpu_custom_call.1} parent=5 // pred_check_branch
        %186 = sbr.rel (%p184) target = $region24
      $region23: #{tpu_custom_call.1} parent=5 // pred_region
        // Predicated region
        $region25: #{tpu_custom_call.1} parent=23 // pred_check
          %p187 = pneg %p50
        $region26: #{tpu_custom_call.1} parent=23 // pred_check_branch
          %189 = sbr.rel (%p187) target = $region28
        $region27: #{tpu_custom_call.1} parent=23 // pred_region
          %s190 = sand.u32 %s40, 1
          %s191 = scalar_lea.sflag [#allocation3], %s190
          %s192 = sand.u32 %s40, 1
          %s193 = smul.addr %s192, 16
          %s194 = scalar_lea.vmem [#allocation2], %s193
          %s195 = smul.u32 2, %s23
          %s197 = ssub.s32 256, 256
          %198 = vsyncadd %s191, %s197
          %s199 = smul.addr %s24, 2
          %s200 = sadd.s32 %s195, %s199
          %s201 = smul.addr %s200, 128
          %s202 = scalar_lea.hbm %s0, %s201
          %s203 = sshll.u32 %s194, 4
          %s204 = int_to_ptr.vmem [resolvable:$true] %s203
          %209 = dma.hbm_to_vmem [thread:$0]  %s202, 256, %s204, %s191, 128, 128, 8
        $region28: #{tpu_custom_call.1} parent=23 // pred_fallthru
          _
      $region24: #{tpu_custom_call.1} parent=5 // pred_fallthru
        _
      %p210 = scmp.le.s32.totalorder 1, %s16
      %p211 = scmp.lt.s32.totalorder %s16, 3
      %p212 = pnand %p210, %p211
      %p213 = pneg %p212
      // Predicated region
      $region29: #{tpu_custom_call.1} parent=5 // pred_check
        _
      $region30: #{tpu_custom_call.1} parent=5 // pred_check_branch
        %215 = sbr.rel (%p212) target = $region32
      $region31: #{tpu_custom_call.1} parent=5 // pred_region
        %s216 = ssub.s32 %s16, 1
        %s217 = sand.u32 %s43, 1
        %s218 = scalar_lea.sflag [#allocation3], %s217
        %s219 = sand.u32 %s43, 1
        %s220 = smul.addr %s219, 16
        %s221 = scalar_lea.vmem [#allocation2], %s220
        // Predicated region
        $region33: #{tpu_custom_call.1} parent=31 // pred_check
          %p222 = pneg %p56
        $region34: #{tpu_custom_call.1} parent=31 // pred_check_branch
          %224 = sbr.rel (%p222) target = $region36
        $region35: #{tpu_custom_call.1} parent=31 // pred_region
          %225 = dma.done %s218, 256
        $region36: #{tpu_custom_call.1} parent=31 // pred_fallthru
          _
        // Predicated region
        $region37: #{tpu_custom_call.1} parent=31 // pred_check
          %p226 = pneg %p82
        $region38: #{tpu_custom_call.1} parent=31 // pred_check_branch
          %228 = sbr.rel (%p226) target = $region40
        $region39: #{tpu_custom_call.1} parent=31 // pred_region
          %229 = dma.done [#allocation6], 256
        $region40: #{tpu_custom_call.1} parent=31 // pred_fallthru
          _
        // Predicated region
        $region41: #{tpu_custom_call.1} parent=31 // pred_check
          %p230 = pneg %p108
        $region42: #{tpu_custom_call.1} parent=31 // pred_check_branch
          %232 = sbr.rel (%p230) target = $region44
        $region43: #{tpu_custom_call.1} parent=31 // pred_region
          %233 = dma.done [#allocation6], 256
        $region44: #{tpu_custom_call.1} parent=31 // pred_fallthru
          _
        %s234 = sand.u32 %s43, 1
        %s235 = scalar_lea.sflag [#allocation3], %s234
        %s236 = sand.u32 %s43, 1
        %s237 = smul.addr %s236, 16
        %s238 = scalar_lea.vmem [#allocation2], %s237
        %p239 = pneg %p56
        %p240 = pneg %p53
        %p241 = pneg %p82
        %p242 = pneg %p79
        %p243 = pneg %p108
        %p244 = pneg %p105
        %p245 = pneg %p136
        %p246 = pneg %p133
        %s247 = sand.u32 %s123, 1
        %s248 = scalar_lea.sflag [#allocation4], %s247
        %s249 = sand.u32 %s123, 1
        %s250 = smul.addr %s249, 16
        %s251 = scalar_lea.vmem [#allocation8], %s250
        %s252 = smul.u32 2, %s25
        %s253 = smul.u32 2, %s25
        %s254 = smul.u32 2, %s25
        %s255 = smul.u32 2, %s25
        %v256 = vld [vmem:[#allocation5] sm:$0xff]
        %v257 = vld [vmem:[#allocation5 + $0x8] sm:$0xff]
        %v258 = vld [vmem:[#allocation7] sm:$0xff]
        %v259 = vld [vmem:[#allocation7 + $0x8] sm:$0xff]
        %v260 = vlaneseq
        %v261 = vand.u32 %v260, 127
        %v262 = vand.u32 %v261, 1
        %vm263 = vcmp.eq.s32.totalorder %v262, 0
        %v264 = vld [vmem:[%s221] sm:$0xff]
        %v265 = vld [vmem:[%s221 + $0x8] sm:$0xff]
        %266 = vrot.lane.b32.xlu0 %v264, 127
        %v267 = vpop.permute.xlu0 %266
        %268 = vrot.lane.b32.xlu0 %v265, 127
        %v269 = vpop.permute.xlu0 %268
        %270 = vrot.lane.b32.xlu0 %v264, 1
        %v271 = vpop.permute.xlu0 %270
        %272 = vrot.lane.b32.xlu0 %v265, 1
        %v273 = vpop.permute.xlu0 %272
        %v274 = vsel %vm263, %v267, %v271
        %v275 = vsel %vm263, %v269, %v273
        %v276 = vmul.f32 %v264, %v256
        %v277 = vmul.f32 %v265, %v257
        %v278 = vmul.f32 %v274, %v258
        %v279 = vmul.f32 %v275, %v259
        %v280 = vadd.f32 %v276, %v278
        %v281 = vadd.f32 %v277, %v279
        %282 = vst [vmem:[%s251] sm:$0xff] %v280
        %283 = vst [vmem:[%s251 + $0x8] sm:$0xff] %v281
        %s284 = sand.u32 %s123, 1
        %s285 = scalar_lea.sflag [#allocation4], %s284
        %s286 = sand.u32 %s123, 1
        %s287 = smul.addr %s286, 16
        %s288 = scalar_lea.vmem [#allocation8], %s287
        // Predicated region
        $region45: #{tpu_custom_call.1} parent=31 // pred_check
          %p289 = pneg %p133
        $region46: #{tpu_custom_call.1} parent=31 // pred_check_branch
          %291 = sbr.rel (%p289) target = $region48
        $region47: #{tpu_custom_call.1} parent=31 // pred_region
          %s292 = smul.u32 2, %s25
          %s294 = ssub.s32 256, 256
          %295 = vsyncadd %s285, %s294
          %s296 = smul.addr %s26, 2
          %s297 = sadd.s32 %s292, %s296
          %s298 = smul.addr %s297, 128
          %s299 = scalar_lea.hbm %s3, %s298
          %s300 = sshll.u32 %s288, 4
          %s301 = int_to_ptr.vmem [resolvable:$true] %s300
          %306 = dma.vmem_to_hbm [thread:$0]  %s301, 256, %s299, %s285, 128, 128, 8
        $region48: #{tpu_custom_call.1} parent=31 // pred_fallthru
          _
      $region32: #{tpu_custom_call.1} parent=5 // pred_fallthru
        _
      %p307 = scmp.le.s32.totalorder 2, %s16
      // Predicated region
      $region49: #{tpu_custom_call.1} parent=5 // pred_check
        %p308 = pneg %p307
      $region50: #{tpu_custom_call.1} parent=5 // pred_check_branch
        %310 = sbr.rel (%p308) target = $region52
      $region51: #{tpu_custom_call.1} parent=5 // pred_region
        %s311 = ssub.s32 %s16, 2
        // Predicated region
        $region53: #{tpu_custom_call.1} parent=51 // pred_check
          %p312 = pneg %p139
        $region54: #{tpu_custom_call.1} parent=51 // pred_check_branch
          %314 = sbr.rel (%p312) target = $region56
        $region55: #{tpu_custom_call.1} parent=51 // pred_region
          %s315 = sand.u32 %s124, 1
          %s316 = scalar_lea.sflag [#allocation4], %s315
          %s317 = sand.u32 %s124, 1
          %s318 = smul.addr %s317, 16
          %s319 = scalar_lea.vmem [#allocation8], %s318
          %320 = dma.done %s316, 256
        $region56: #{tpu_custom_call.1} parent=51 // pred_fallthru
          _
      $region52: #{tpu_custom_call.1} parent=5 // pred_fallthru
        _
    $region6: #{tpu_custom_call.1} parent=1 // loop_footer
      %s20 = sadd.s32 1, %s16
    $region7: #{tpu_custom_call.1} parent=1 // loop_footer_branch
      %15 = sbr.rel target = $region3
    $region8: #{tpu_custom_call.1} parent=1 // loop_exit
      _
    %321 = vsyncpa [#allocation3], 1
    %s322 = scalar_lea.sflag [#allocation3], 1
    %323 = vsyncpa %s322, 1
    %324 = vsyncpa [#allocation6], 1
    %325 = vsyncpa [#allocation4], 1
    %s326 = scalar_lea.sflag [#allocation4], 1
    %327 = vsyncpa %s326, 1

</llo_original>
